<compile_context>
chip_gen: v6e
topology: v6e:2x2x1
jax: 0.10.0
libtpu: 0.0.40
codegen_flags: <defaults>
</compile_context>

<pallas_src>
import functools

import jax
import jax.numpy as jnp
from jax.experimental import pallas as pl
from jax.experimental.pallas import tpu as pltpu


def _round_up(x, m):
    return ((x + m - 1) // m) * m


def _vmem_capacity_bytes():
    """Physical VMEM of the attached TPU; conservative 64 MiB (v7x) fallback."""
    try:
        info = pltpu.get_tpu_info()
        for name in ("vmem_capacity_bytes", "vmem_size_bytes", "vmem_bytes"):
            v = getattr(info, name, None)
            if v:
                return int(v)
    except Exception:
        pass
    return 64 * 1024 * 1024


# ----------------------------------------------------------------------------
# Fused kernel: char max-pool (halving tree) + concat + Highway
# ----------------------------------------------------------------------------
def embedding_highway_kernel(word_ref, char_ref, wl_ref, bl_ref, wg_ref, bg_ref,
                             out_ref, *, num_layers, dw, dc, w_len, d_out, d_pad):
    # word_ref: (T, Dw) bf16     char_ref: (T, W*Dc) bf16
    # wl_ref / wg_ref: (L, Dp, Dp) bf16 (already (in, out))
    # bl_ref / bg_ref: (L, 1, Dp)  f32
    # out_ref: (T, D)  (exactly D lanes, no post-kernel column slice needed)
    char = char_ref[...].astype(jnp.float32)                 # (T, W*Dc)

    # ---- char max-pool over word_length: halving tree, ceil(log2 W) maxima ----
    w = w_len
    c = char
    while w > 1:                                             # static unroll
        half = w // 2
        upper = w - half
        lo = c[:, :half * dc]
        hi = c[:, (w - half) * dc:]                          # last `half` words
        folded = jnp.maximum(lo, hi)
        if upper > half:                                     # odd: carry middle word
            c = jnp.concatenate([folded, c[:, half * dc:upper * dc]], axis=-1)
        else:
            c = folded
        w = upper
    pooled = c                                               # (T, Dc) f32

    # ---- x = [word | pooled_char | zero pad to Dp] built in registers ----
    word = word_ref[...].astype(jnp.float32)                 # (T, Dw)
    tile = word.shape[0]
    parts = [word, pooled]
    if d_pad > dw + dc:
        parts.append(jnp.zeros((tile, d_pad - (dw + dc)), dtype=jnp.float32))
    x = jnp.concatenate(parts, axis=-1)                      # (T, Dp) f32

    # ---- Highway: bf16 MXU matmuls, f32 accumulation + f32 elementwise ----
    for i in range(num_layers):                              # static unroll
        xb = x.astype(jnp.bfloat16)
        h = jnp.dot(xb, wl_ref[i], preferred_element_type=jnp.float32) + bl_ref[i]
        h = jnp.maximum(h, 0.0)                              # relu    (VPU)
        g = jnp.dot(xb, wg_ref[i], preferred_element_type=jnp.float32) + bg_ref[i]
        g = jax.nn.sigmoid(g)                                # sigmoid (EUP)
        x = x + g * (h - x)                                  # == g*h + (1-g)*x

    out_ref[...] = x[:, :d_out].astype(out_ref.dtype)


# ----------------------------------------------------------------------------
# Wrapper
# ----------------------------------------------------------------------------
def embedding_forward(word_emb, char_emb, wl, bl, wg, bg, *, row_tile=None):
    B, S, Dw = word_emb.shape
    _, _, W, Dc = char_emb.shape
    D = Dw + Dc
    N = B * S
    L = wl.shape[0]
    assert wl.shape == (L, D, D) and wg.shape == (L, D, D)
    assert bl.shape == (L, 1, D) and bg.shape == (L, 1, D)

    out_dtype = word_emb.dtype
    out_bytes = jnp.dtype(out_dtype).itemsize

    # Lane-dense feature width inside the kernel (MXU-friendly K/N).
    Dp = _round_up(D, 128)

    # Generation-aware VMEM budget: ~5/8 of physical VMEM
    # (v5e/v6e: ~80 MiB, v7x / unknown: ~40 MiB).
    vmem_cap = _vmem_capacity_bytes()
    budget = (vmem_cap * 5) // 8

    def _vmem_bytes(tile):
        io_in = 2 * tile * (Dw + W * Dc) * 2                  # bf16 inputs, 2-buffered
        io_out = 2 * tile * D * out_bytes                     # output, 2-buffered
        wts = 2 * L * Dp * Dp * 2 + 2 * L * Dp * 4            # bf16 W's + f32 b's
        return io_in + io_out + 2 * wts                       # weights may 2-buffer

    # Row tile: up to 1024 rows to amortize ~0.35us/step overhead and the MXU's
    # per-step RHS pushes, shrunk to fit the VMEM budget.
    if row_tile is None:
        row_tile = min(1024, _round_up(N, 8))
    row_tile = max(8, _round_up(row_tile, 8))
    while row_tile > 8 and _vmem_bytes(row_tile) > budget:
        row_tile = _round_up(max(8, row_tile // 2), 8)
    # Guarantee >= 2 grid steps so v7x's two TensorCores both get work.
    if N > 8:
        row_tile = min(row_tile, max(8, _round_up((N + 1) // 2, 8)))

    Np = _round_up(N, row_tile)

    # Flatten (B, S) -> N rows; char as (N, W*Dc) so the minor tile is lane
    # contiguous.  bf16 halves the dominant HBM stream (pool is order-preserving
    # in bf16; matmuls consume bf16 anyway).
    word2 = word_emb.reshape(N, Dw).astype(jnp.bfloat16)
    char2 = char_emb.reshape(N, W * Dc).astype(jnp.bfloat16)
    if Np > N:
        word2 = jnp.pad(word2, ((0, Np - N), (0, 0)))
        char2 = jnp.pad(char2, ((0, Np - N), (0, 0)))

    # Zero-pad weights to (L, Dp, Dp) bf16 and biases to (L, 1, Dp) f32.  With
    # zero padding the extra lanes of x stay exactly 0 through every layer.
    pd = Dp - D
    wl_p = jnp.pad(wl, ((0, 0), (0, pd), (0, pd))).astype(jnp.bfloat16)
    wg_p = jnp.pad(wg, ((0, 0), (0, pd), (0, pd))).astype(jnp.bfloat16)
    bl_p = jnp.pad(bl, ((0, 0), (0, 0), (0, pd))).astype(jnp.float32)
    bg_p = jnp.pad(bg, ((0, 0), (0, 0), (0, pd))).astype(jnp.float32)

    grid = (Np // row_tile,)
    const3 = lambda i: (0, 0, 0)
    vmem_limit = int(min(vmem_cap * 3 // 4,
                         max(32 * 1024 * 1024, 2 * _vmem_bytes(row_tile))))

    out = pl.pallas_call(
        functools.partial(embedding_highway_kernel, num_layers=L, dw=Dw, dc=Dc,
                          w_len=W, d_out=D, d_pad=Dp),
        out_shape=jax.ShapeDtypeStruct((Np, D), out_dtype),
        grid=grid,
        in_specs=[
            pl.BlockSpec((row_tile, Dw), lambda i: (i, 0)),
            pl.BlockSpec((row_tile, W * Dc), lambda i: (i, 0)),
            pl.BlockSpec((L, Dp, Dp), const3),   # constant index -> fetched once
            pl.BlockSpec((L, 1, Dp), const3),
            pl.BlockSpec((L, Dp, Dp), const3),
            pl.BlockSpec((L, 1, Dp), const3),
        ],
        out_specs=pl.BlockSpec((row_tile, D), lambda i: (i, 0)),
        compiler_params=pltpu.CompilerParams(
            dimension_semantics=("parallel",),    # megacore split on v7x
            vmem_limit_bytes=vmem_limit,
        ),
    )(word2, char2, wl_p, bl_p, wg_p, bg_p)

    if Np > N:
        out = out[:N]
    return out.reshape(B, S, D)


# ----------------------------------------------------------------------------
# Pure-JAX reference mirroring kernel numerics (bf16 inputs/MXU, f32 math)
# ----------------------------------------------------------------------------
def embedding_reference(word_emb, char_emb, wl, bl, wg, bg):
    pooled = jnp.max(char_emb.astype(jnp.bfloat16), axis=2).astype(jnp.float32)
    word = word_emb.astype(jnp.bfloat16).astype(jnp.float32)
    x = jnp.concatenate([word, pooled], axis=-1)
    L = wl.shape[0]
    for i in range(L):
        xb = x.astype(jnp.bfloat16)
        h = jnp.dot(xb, wl[i].astype(jnp.bfloat16),
                    preferred_element_type=jnp.float32) + bl[i, 0]
        h = jnp.maximum(h, 0.0)
        g = jax.nn.sigmoid(jnp.dot(xb, wg[i].astype(jnp.bfloat16),
                                   preferred_element_type=jnp.float32) + bg[i, 0])
        x = x + g * (h - x)
    return x


if __name__ == "__main__":
    # Small, module-consistent shapes.
    B, S, W = 2, 8, 4          # batch, sentence_length, word_length
    Dw, Dc = 16, 16            # word_dim, char_dim
    D = Dw + Dc
    highway_layers = 2

    key = jax.random.PRNGKey(0)
    k_word, k_char, k_wl, k_bl, k_wg, k_bg = jax.random.split(key, 6)

    word_emb = jax.random.normal(k_word, (B, S, Dw), dtype=jnp.float32)
    char_emb = jax.random.normal(k_char, (B, S, W, Dc), dtype=jnp.float32)

    # Highway parameters stored as (L, in, out) so the kernel computes x @ W
    # directly (equivalent to PyTorch's x @ W^T with W = (out, in)).
    scale = 1.0 / jnp.sqrt(jnp.float32(D))
    wl = jax.random.normal(k_wl, (highway_layers, D, D), dtype=jnp.float32) * scale
    wg = jax.random.normal(k_wg, (highway_layers, D, D), dtype=jnp.float32) * scale
    bl = jax.random.normal(k_bl, (highway_layers, 1, D), dtype=jnp.float32) * 0.1
    bg = jax.random.normal(k_bg, (highway_layers, 1, D), dtype=jnp.float32) * 0.1

    out = embedding_forward(word_emb, char_emb, wl, bl, wg, bg)
    out = jax.block_until_ready(out)

    ref = embedding_reference(word_emb, char_emb, wl, bl, wg, bg)
    assert out.shape == (B, S, D), out.shape
    assert jnp.allclose(out, ref, atol=2e-2, rtol=2e-2), (
        "mismatch vs reference, max abs diff = "
        f"{float(jnp.max(jnp.abs(out - ref)))}")

    print("KERNEL_OK")
</pallas_src>

<mosaic_0001>
module attributes {stable_mosaic.version = 11 : i64} {
  func.func @embedding_highway_kernel(%arg0: i32, %arg1: memref<8x16xbf16, #tpu.memory_space<vmem>>, %arg2: memref<8x64xbf16, #tpu.memory_space<vmem>>, %arg3: memref<2x128x128xbf16, #tpu.memory_space<vmem>>, %arg4: memref<2x1x128xf32, #tpu.memory_space<vmem>>, %arg5: memref<2x128x128xbf16, #tpu.memory_space<vmem>>, %arg6: memref<2x1x128xf32, #tpu.memory_space<vmem>>, %arg7: memref<8x32xf32, #tpu.memory_space<vmem>>) attributes {dimension_semantics = [#tpu.dimension_semantics<parallel>], iteration_bounds = array<i64: 2>, scalar_prefetch = 0 : i64, scratch_operands = 0 : i64, tpu.core_type = #tpu.core_type<tc>, window_params = [{transform_indices = @transform_0, window_bounds = array<i64: 8, 16>}, {transform_indices = @transform_1, window_bounds = array<i64: 8, 64>}, {pipeline_mode = #tpu.pipeline_mode<synchronous>, transform_indices = @transform_2, window_bounds = array<i64: 2, 128, 128>}, {pipeline_mode = #tpu.pipeline_mode<synchronous>, transform_indices = @transform_3, window_bounds = array<i64: 2, 1, 128>}, {pipeline_mode = #tpu.pipeline_mode<synchronous>, transform_indices = @transform_4, window_bounds = array<i64: 2, 128, 128>}, {pipeline_mode = #tpu.pipeline_mode<synchronous>, transform_indices = @transform_5, window_bounds = array<i64: 2, 1, 128>}, {transform_indices = @transform_6, window_bounds = array<i64: 8, 32>}]} {
    %c0 = arith.constant 0 : index
    %c0_0 = arith.constant 0 : index
    %0 = vector.load %arg2[%c0, %c0_0] : memref<8x64xbf16, #tpu.memory_space<vmem>>, vector<8x64xbf16>
    %1 = arith.extf %0 : vector<8x64xbf16> to vector<8x64xf32>
    %2 = vector.extract_strided_slice %1 {offsets = [0, 0], sizes = [8, 32], strides = [1, 1]} : vector<8x64xf32> to vector<8x32xf32>
    %3 = vector.extract_strided_slice %1 {offsets = [0, 32], sizes = [8, 32], strides = [1, 1]} : vector<8x64xf32> to vector<8x32xf32>
    %4 = arith.maximumf %2, %3 : vector<8x32xf32>
    %5 = vector.extract_strided_slice %4 {offsets = [0, 0], sizes = [8, 16], strides = [1, 1]} : vector<8x32xf32> to vector<8x16xf32>
    %6 = vector.extract_strided_slice %4 {offsets = [0, 16], sizes = [8, 16], strides = [1, 1]} : vector<8x32xf32> to vector<8x16xf32>
    %7 = arith.maximumf %5, %6 : vector<8x16xf32>
    %c0_1 = arith.constant 0 : index
    %c0_2 = arith.constant 0 : index
    %8 = vector.load %arg1[%c0_1, %c0_2] : memref<8x16xbf16, #tpu.memory_space<vmem>>, vector<8x16xbf16>
    %9 = arith.extf %8 : vector<8x16xbf16> to vector<8x16xf32>
    %cst = arith.constant 0.000000e+00 : f32
    %10 = vector.broadcast %cst : f32 to vector<8x96xf32>
    %11 = tpu.concatenate %9, %7, %10 in 1 : vector<8x16xf32>, vector<8x16xf32>, vector<8x96xf32> -> vector<8x128xf32>
    %12 = arith.truncf %11 : vector<8x128xf32> to vector<8x128xbf16>
    %c0_3 = arith.constant 0 : index
    %c0_4 = arith.constant 0 : index
    %c0_5 = arith.constant 0 : index
    %13 = vector.load %arg3[%c0_3, %c0_4, %c0_5] : memref<2x128x128xbf16, #tpu.memory_space<vmem>>, vector<1x128x128xbf16>
    %14 = vector.shape_cast %13 : vector<1x128x128xbf16> to vector<128x128xbf16>
    %cst_6 = arith.constant dense<0.000000e+00> : vector<8x128xf32>
    %15 = tpu.matmul %12, %14, %cst_6 {dimension_numbers = #tpu.dot_dimension_numbers<[1], [0], [0], [1], [0, 0, 1, 1], [], []>} : vector<8x128xbf16>, vector<128x128xbf16>, vector<8x128xf32> -> vector<8x128xf32>
    %c0_7 = arith.constant 0 : index
    %c0_8 = arith.constant 0 : index
    %c0_9 = arith.constant 0 : index
    %16 = vector.load %arg4[%c0_7, %c0_8, %c0_9] : memref<2x1x128xf32, #tpu.memory_space<vmem>>, vector<1x1x128xf32>
    %17 = vector.shape_cast %16 : vector<1x1x128xf32> to vector<1x128xf32>
    %18 = vector.broadcast %17 : vector<1x128xf32> to vector<8x128xf32>
    %19 = arith.addf %15, %18 : vector<8x128xf32>
    %cst_10 = arith.constant 0.000000e+00 : f32
    %20 = vector.broadcast %cst_10 : f32 to vector<8x128xf32>
    %21 = arith.maximumf %19, %20 : vector<8x128xf32>
    %c0_11 = arith.constant 0 : index
    %c0_12 = arith.constant 0 : index
    %c0_13 = arith.constant 0 : index
    %22 = vector.load %arg5[%c0_11, %c0_12, %c0_13] : memref<2x128x128xbf16, #tpu.memory_space<vmem>>, vector<1x128x128xbf16>
    %23 = vector.shape_cast %22 : vector<1x128x128xbf16> to vector<128x128xbf16>
    %cst_14 = arith.constant dense<0.000000e+00> : vector<8x128xf32>
    %24 = tpu.matmul %12, %23, %cst_14 {dimension_numbers = #tpu.dot_dimension_numbers<[1], [0], [0], [1], [0, 0, 1, 1], [], []>} : vector<8x128xbf16>, vector<128x128xbf16>, vector<8x128xf32> -> vector<8x128xf32>
    %c0_15 = arith.constant 0 : index
    %c0_16 = arith.constant 0 : index
    %c0_17 = arith.constant 0 : index
    %25 = vector.load %arg6[%c0_15, %c0_16, %c0_17] : memref<2x1x128xf32, #tpu.memory_space<vmem>>, vector<1x1x128xf32>
    %26 = vector.shape_cast %25 : vector<1x1x128xf32> to vector<1x128xf32>
    %27 = vector.broadcast %26 : vector<1x128xf32> to vector<8x128xf32>
    %28 = arith.addf %24, %27 : vector<8x128xf32>
    %29 = arith.negf %28 : vector<8x128xf32>
    %30 = math.exp %29 : vector<8x128xf32>
    %cst_18 = arith.constant 1.000000e+00 : f32
    %31 = vector.broadcast %cst_18 : f32 to vector<8x128xf32>
    %32 = arith.addf %31, %30 : vector<8x128xf32>
    %33 = arith.divf %31, %32 : vector<8x128xf32>
    %34 = arith.subf %21, %11 : vector<8x128xf32>
    %35 = arith.mulf %33, %34 : vector<8x128xf32>
    %36 = arith.addf %11, %35 : vector<8x128xf32>
    %37 = arith.truncf %36 : vector<8x128xf32> to vector<8x128xbf16>
    %c1 = arith.constant 1 : index
    %c0_19 = arith.constant 0 : index
    %c0_20 = arith.constant 0 : index
    %38 = vector.load %arg3[%c1, %c0_19, %c0_20] : memref<2x128x128xbf16, #tpu.memory_space<vmem>>, vector<1x128x128xbf16>
    %39 = vector.shape_cast %38 : vector<1x128x128xbf16> to vector<128x128xbf16>
    %cst_21 = arith.constant dense<0.000000e+00> : vector<8x128xf32>
    %40 = tpu.matmul %37, %39, %cst_21 {dimension_numbers = #tpu.dot_dimension_numbers<[1], [0], [0], [1], [0, 0, 1, 1], [], []>} : vector<8x128xbf16>, vector<128x128xbf16>, vector<8x128xf32> -> vector<8x128xf32>
    %c1_22 = arith.constant 1 : index
    %c0_23 = arith.constant 0 : index
    %c0_24 = arith.constant 0 : index
    %41 = vector.load %arg4[%c1_22, %c0_23, %c0_24] : memref<2x1x128xf32, #tpu.memory_space<vmem>>, vector<1x1x128xf32>
    %42 = vector.shape_cast %41 : vector<1x1x128xf32> to vector<1x128xf32>
    %43 = vector.broadcast %42 : vector<1x128xf32> to vector<8x128xf32>
    %44 = arith.addf %40, %43 : vector<8x128xf32>
    %cst_25 = arith.constant 0.000000e+00 : f32
    %45 = vector.broadcast %cst_25 : f32 to vector<8x128xf32>
    %46 = arith.maximumf %44, %45 : vector<8x128xf32>
    %c1_26 = arith.constant 1 : index
    %c0_27 = arith.constant 0 : index
    %c0_28 = arith.constant 0 : index
    %47 = vector.load %arg5[%c1_26, %c0_27, %c0_28] : memref<2x128x128xbf16, #tpu.memory_space<vmem>>, vector<1x128x128xbf16>
    %48 = vector.shape_cast %47 : vector<1x128x128xbf16> to vector<128x128xbf16>
    %cst_29 = arith.constant dense<0.000000e+00> : vector<8x128xf32>
    %49 = tpu.matmul %37, %48, %cst_29 {dimension_numbers = #tpu.dot_dimension_numbers<[1], [0], [0], [1], [0, 0, 1, 1], [], []>} : vector<8x128xbf16>, vector<128x128xbf16>, vector<8x128xf32> -> vector<8x128xf32>
    %c1_30 = arith.constant 1 : index
    %c0_31 = arith.constant 0 : index
    %c0_32 = arith.constant 0 : index
    %50 = vector.load %arg6[%c1_30, %c0_31, %c0_32] : memref<2x1x128xf32, #tpu.memory_space<vmem>>, vector<1x1x128xf32>
    %51 = vector.shape_cast %50 : vector<1x1x128xf32> to vector<1x128xf32>
    %52 = vector.broadcast %51 : vector<1x128xf32> to vector<8x128xf32>
    %53 = arith.addf %49, %52 : vector<8x128xf32>
    %54 = arith.negf %53 : vector<8x128xf32>
    %55 = math.exp %54 : vector<8x128xf32>
    %cst_33 = arith.constant 1.000000e+00 : f32
    %56 = vector.broadcast %cst_33 : f32 to vector<8x128xf32>
    %57 = arith.addf %56, %55 : vector<8x128xf32>
    %58 = arith.divf %56, %57 : vector<8x128xf32>
    %59 = arith.subf %46, %36 : vector<8x128xf32>
    %60 = arith.mulf %58, %59 : vector<8x128xf32>
    %61 = arith.addf %36, %60 : vector<8x128xf32>
    %62 = vector.extract_strided_slice %61 {offsets = [0, 0], sizes = [8, 32], strides = [1, 1]} : vector<8x128xf32> to vector<8x32xf32>
    %c0_34 = arith.constant 0 : index
    %c0_35 = arith.constant 0 : index
    %63 = vector.load %arg7[%c0_34, %c0_35] : memref<8x32xf32, #tpu.memory_space<vmem>>, vector<8x32xf32>
    tpu.vector_store %arg7[%c0_34, %c0_35], %62 {strides = array<i32>} : memref<8x32xf32, #tpu.memory_space<vmem>>, vector<8x32xf32>,
    return
  }
  func.func @transform_0(%arg0: i32) -> (i32, i32) {
    %c0_i32 = arith.constant 0 : i32
    %c0_i32_0 = arith.constant 0 : i32
    return %arg0, %c0_i32 : i32, i32
  }
  func.func @transform_1(%arg0: i32) -> (i32, i32) {
    %c0_i32 = arith.constant 0 : i32
    %c0_i32_0 = arith.constant 0 : i32
    return %arg0, %c0_i32 : i32, i32
  }
  func.func @transform_2(%arg0: i32) -> (i32, i32, i32) {
    %c0_i32 = arith.constant 0 : i32
    %c0_i32_0 = arith.constant 0 : i32
    %c0_i32_1 = arith.constant 0 : i32
    %c0_i32_2 = arith.constant 0 : i32
    return %c0_i32, %c0_i32_0, %c0_i32_1 : i32, i32, i32
  }
  func.func @transform_3(%arg0: i32) -> (i32, i32, i32) {
    %c0_i32 = arith.constant 0 : i32
    %c0_i32_0 = arith.constant 0 : i32
    %c0_i32_1 = arith.constant 0 : i32
    %c0_i32_2 = arith.constant 0 : i32
    return %c0_i32, %c0_i32_0, %c0_i32_1 : i32, i32, i32
  }
  func.func @transform_4(%arg0: i32) -> (i32, i32, i32) {
    %c0_i32 = arith.constant 0 : i32
    %c0_i32_0 = arith.constant 0 : i32
    %c0_i32_1 = arith.constant 0 : i32
    %c0_i32_2 = arith.constant 0 : i32
    return %c0_i32, %c0_i32_0, %c0_i32_1 : i32, i32, i32
  }
  func.func @transform_5(%arg0: i32) -> (i32, i32, i32) {
    %c0_i32 = arith.constant 0 : i32
    %c0_i32_0 = arith.constant 0 : i32
    %c0_i32_1 = arith.constant 0 : i32
    %c0_i32_2 = arith.constant 0 : i32
    return %c0_i32, %c0_i32_0, %c0_i32_1 : i32, i32, i32
  }
  func.func @transform_6(%arg0: i32) -> (i32, i32) {
    %c0_i32 = arith.constant 0 : i32
    %c0_i32_0 = arith.constant 0 : i32
    return %arg0, %c0_i32 : i32, i32
  }
}

</mosaic_0001>

<llo_original>
// kernel: tpu_custom_call.1
$region0: #{tpu_custom_call.1}
  #allocation0 [shape = 'u32[]', space=smem, size = 0x4, offset = 0x4, fixed_abs, tag = 'smem constant byte address 0x4 - core index']
  #allocation1 [shape = 'u32[144,128]{1,0:T(1,128)}', space=vmem, size = 0x12000, scoped, tag = 'internal scratch']
  %s0 = inlined_call_operand.hbm [shape: bf16[16,16], index: 0, kind: input, shape index: {}]
  %s1 = inlined_call_operand.hbm [shape: bf16[16,64], index: 1, kind: input, shape index: {}]
  %s2 = inlined_call_operand.hbm [shape: bf16[2,128,128], index: 2, kind: input, shape index: {}]
  %s3 = inlined_call_operand.vmem [shape: f32[2,1,128], index: 3, kind: input, shape index: {}]
  %s4 = inlined_call_operand.hbm [shape: bf16[2,128,128], index: 4, kind: input, shape index: {}]
  %s5 = inlined_call_operand.vmem [shape: f32[2,1,128], index: 5, kind: input, shape index: {}]
  %s6 = inlined_call_operand.hbm [shape: f32[16,32], index: 6, kind: output, shape index: {}]
  %s7 = sld [smem:[#allocation0]]
  $region73: #{tpu_custom_call.1} parent=0
    _
  %s9 = ssub.s32 1, %s7
  %s10 = scalar_select 0, %s9, %s7
  $region1: #{tpu_custom_call.1} parent=0
    #allocation2 [shape = 'u8[4096]{0}', space=vmem, size = 0x1000, scoped, tag = 'input window, operand 0']
    #allocation3 [shape = 's32[2]{0}', space=sflag, size = 0x8, scoped, tag = 'scoped memory for tpu_custom_call.1']
    #allocation4 [shape = 's32[2]{0}', space=sflag, size = 0x8, scoped, tag = 'scoped memory for tpu_custom_call.1']
    #allocation5 [shape = 'u8[4096]{0}', space=vmem, size = 0x1000, scoped, tag = 'input window, operand 1']
    #allocation6 [shape = 's32[2]{0}', space=sflag, size = 0x8, scoped, tag = 'scoped memory for tpu_custom_call.1']
    #allocation7 [shape = 'u8[65536]{0}', space=vmem, size = 0x10000, scoped, tag = 'input window, operand 2, single buffered']
    #allocation8 [shape = 'u8[65536]{0}', space=vmem, size = 0x10000, scoped, tag = 'input window, operand 4, single buffered']
    #allocation9 [shape = 's32[1]{0}', space=sflag, size = 0x4, scoped, tag = 'scoped memory for tpu_custom_call.1']
    #allocation10 [shape = 'u8[8192]{0}', space=vmem, size = 0x2000, scoped, tag = 'output window, operand 0']
    %11 = vsyncpa [#allocation3], 0
    %s12 = scalar_lea.sflag [#allocation3], 1
    %13 = vsyncpa %s12, 0
    %14 = vsyncpa [#allocation6], 0
    %s15 = scalar_lea.sflag [#allocation6], 1
    %16 = vsyncpa %s15, 0
    %17 = vsyncpa [#allocation9], 0
    %18 = vsyncpa [#allocation4], 0
    %s19 = scalar_lea.sflag [#allocation4], 1
    %20 = vsyncpa %s19, 0
    loop: start=0, step=1, limit=4
    $region2: #{tpu_custom_call.1} parent=1 // loop_pre_header
      _
    $region3: #{tpu_custom_call.1} parent=1 // loop_header
      %s22 = sphi 0, %s26
      %p23 = scmp.ge.s32.totalorder %s22, 4
      %s32 = sphi 0, %s34
      %s35 = sphi 0, %s32
      %s36 = sphi 0, %s35
      %s52 = sphi 0, %s36
      %s58 = sphi 0, %s60
      %s61 = sphi 0, %s58
      %s62 = sphi 0, %s61
      %s78 = sphi 0, %s62
      %s82 = sphi 0, %s82
      %s84 = sphi 0, %s82
      %s85 = sphi 0, %s84
      %s99 = sphi 0, %s85
      %s103 = sphi 0, %s103
      %s105 = sphi 0, %s103
      %s106 = sphi 0, %s105
      %s120 = sphi 0, %s106
      %s124 = sphi 0, %s124
      %s126 = sphi 0, %s124
      %s127 = sphi 0, %s126
      %s141 = sphi 0, %s127
      %s145 = sphi 0, %s145
      %s147 = sphi 0, %s145
      %s148 = sphi 0, %s147
      %s162 = sphi 0, %s148
      %s168 = sphi 0, %s170
      %s171 = sphi 0, %s168
      %s172 = sphi 0, %s171
      %s188 = sphi 0, %s172
    $region4: #{tpu_custom_call.1} parent=1 // loop_header_branch
      %25 = sbr.rel (%p23) target = $region8
    $region5: #{tpu_custom_call.1} parent=1 // loop_body
      %s27 = ssub.s32 %s22, 1
      %s28 = ssub.s32 %s22, 2
      %s29 = sadd.s32 %s22, 1
      %s30 = ssub.s32 %s22, %s29
      %p31 = scmp.eq.s32.totalorder %s30, 0
      %s33 = sadd.s32 %s32, 1
      %s34 = scalar_select %p31, %s32, %s33
      %p37 = pneg %p31
      %p38 = scmp.eq.s32.totalorder %s22, 1
      %p39 = por %p37, %p38
      %p40 = scmp.ne.s32.totalorder %s32, %s35
      %p41 = scmp.eq.s32.totalorder %s22, 0
      %p42 = por %p40, %p41
      %p43 = scmp.ne.s32.totalorder %s32, %s35
      %p44 = scmp.eq.s32.totalorder %s27, 1
      %p45 = por %p43, %p44
      %p46 = scmp.ne.s32.totalorder %s35, %s36
      %p47 = scmp.eq.s32.totalorder %s27, 0
      %p48 = por %p46, %p47
      %p49 = scmp.ne.s32.totalorder %s35, %s36
      %p50 = scmp.eq.s32.totalorder %s28, 1
      %p51 = por %p49, %p50
      %p53 = scmp.ne.s32.totalorder %s36, %s52
      %p54 = scmp.eq.s32.totalorder %s28, 0
      %p55 = por %p53, %p54
      %s56 = ssub.s32 %s22, %s29
      %p57 = scmp.eq.s32.totalorder %s56, 0
      %s59 = sadd.s32 %s58, 1
      %s60 = scalar_select %p57, %s58, %s59
      %p63 = pneg %p57
      %p64 = scmp.eq.s32.totalorder %s22, 1
      %p65 = por %p63, %p64
      %p66 = scmp.ne.s32.totalorder %s58, %s61
      %p67 = scmp.eq.s32.totalorder %s22, 0
      %p68 = por %p66, %p67
      %p69 = scmp.ne.s32.totalorder %s58, %s61
      %p70 = scmp.eq.s32.totalorder %s27, 1
      %p71 = por %p69, %p70
      %p72 = scmp.ne.s32.totalorder %s61, %s62
      %p73 = scmp.eq.s32.totalorder %s27, 0
      %p74 = por %p72, %p73
      %p75 = scmp.ne.s32.totalorder %s61, %s62
      %p76 = scmp.eq.s32.totalorder %s28, 1
      %p77 = por %p75, %p76
      %p79 = scmp.ne.s32.totalorder %s62, %s78
      %p80 = scmp.eq.s32.totalorder %s28, 0
      %p81 = por %p79, %p80
      %s83 = sadd.s32 %s82, 1
      %p86 = scmp.eq.s32.totalorder %s22, 1
      %p87 = scmp.ne.s32.totalorder %s82, %s84
      %p88 = scmp.eq.s32.totalorder %s22, 0
      %p89 = por %p87, %p88
      %p90 = scmp.ne.s32.totalorder %s82, %s84
      %p91 = scmp.eq.s32.totalorder %s27, 1
      %p92 = por %p90, %p91
      %p93 = scmp.ne.s32.totalorder %s84, %s85
      %p94 = scmp.eq.s32.totalorder %s27, 0
      %p95 = por %p93, %p94
      %p96 = scmp.ne.s32.totalorder %s84, %s85
      %p97 = scmp.eq.s32.totalorder %s28, 1
      %p98 = por %p96, %p97
      %p100 = scmp.ne.s32.totalorder %s85, %s99
      %p101 = scmp.eq.s32.totalorder %s28, 0
      %p102 = por %p100, %p101
      %s104 = sadd.s32 %s103, 1
      %p107 = scmp.eq.s32.totalorder %s22, 1
      %p108 = scmp.ne.s32.totalorder %s103, %s105
      %p109 = scmp.eq.s32.totalorder %s22, 0
      %p110 = por %p108, %p109
      %p111 = scmp.ne.s32.totalorder %s103, %s105
      %p112 = scmp.eq.s32.totalorder %s27, 1
      %p113 = por %p111, %p112
      %p114 = scmp.ne.s32.totalorder %s105, %s106
      %p115 = scmp.eq.s32.totalorder %s27, 0
      %p116 = por %p114, %p115
      %p117 = scmp.ne.s32.totalorder %s105, %s106
      %p118 = scmp.eq.s32.totalorder %s28, 1
      %p119 = por %p117, %p118
      %p121 = scmp.ne.s32.totalorder %s106, %s120
      %p122 = scmp.eq.s32.totalorder %s28, 0
      %p123 = por %p121, %p122
      %s125 = sadd.s32 %s124, 1
      %p128 = scmp.eq.s32.totalorder %s22, 1
      %p129 = scmp.ne.s32.totalorder %s124, %s126
      %p130 = scmp.eq.s32.totalorder %s22, 0
      %p131 = por %p129, %p130
      %p132 = scmp.ne.s32.totalorder %s124, %s126
      %p133 = scmp.eq.s32.totalorder %s27, 1
      %p134 = por %p132, %p133
      %p135 = scmp.ne.s32.totalorder %s126, %s127
      %p136 = scmp.eq.s32.totalorder %s27, 0
      %p137 = por %p135, %p136
      %p138 = scmp.ne.s32.totalorder %s126, %s127
      %p139 = scmp.eq.s32.totalorder %s28, 1
      %p140 = por %p138, %p139
      %p142 = scmp.ne.s32.totalorder %s127, %s141
      %p143 = scmp.eq.s32.totalorder %s28, 0
      %p144 = por %p142, %p143
      %s146 = sadd.s32 %s145, 1
      %p149 = scmp.eq.s32.totalorder %s22, 1
      %p150 = scmp.ne.s32.totalorder %s145, %s147
      %p151 = scmp.eq.s32.totalorder %s22, 0
      %p152 = por %p150, %p151
      %p153 = scmp.ne.s32.totalorder %s145, %s147
      %p154 = scmp.eq.s32.totalorder %s27, 1
      %p155 = por %p153, %p154
      %p156 = scmp.ne.s32.totalorder %s147, %s148
      %p157 = scmp.eq.s32.totalorder %s27, 0
      %p158 = por %p156, %p157
      %p159 = scmp.ne.s32.totalorder %s147, %s148
      %p160 = scmp.eq.s32.totalorder %s28, 1
      %p161 = por %p159, %p160
      %p163 = scmp.ne.s32.totalorder %s148, %s162
      %p164 = scmp.eq.s32.totalorder %s28, 0
      %p165 = por %p163, %p164
      %s166 = ssub.s32 %s22, %s29
      %p167 = scmp.eq.s32.totalorder %s166, 0
      %s169 = sadd.s32 %s168, 1
      %s170 = scalar_select %p167, %s168, %s169
      %p173 = pneg %p167
      %p174 = scmp.eq.s32.totalorder %s22, 1
      %p175 = por %p173, %p174
      %p176 = scmp.ne.s32.totalorder %s168, %s171
      %p177 = scmp.eq.s32.totalorder %s22, 0
      %p178 = por %p176, %p177
      %p179 = scmp.ne.s32.totalorder %s168, %s171
      %p180 = scmp.eq.s32.totalorder %s27, 1
      %p181 = por %p179, %p180
      %p182 = scmp.ne.s32.totalorder %s171, %s172
      %p183 = scmp.eq.s32.totalorder %s27, 0
      %p184 = por %p182, %p183
      %p185 = scmp.ne.s32.totalorder %s171, %s172
      %p186 = scmp.eq.s32.totalorder %s28, 1
      %p187 = por %p185, %p186
      %p189 = scmp.ne.s32.totalorder %s172, %s188
      %p190 = scmp.eq.s32.totalorder %s28, 0
      %p191 = por %p189, %p190
      %p192 = scmp.le.s32.totalorder 1, %s22
      %p193 = scmp.lt.s32.totalorder %s22, 3
      %p194 = pnand %p192, %p193
      %p195 = pneg %p194
      // Predicated region
      $region9: #{tpu_custom_call.1} parent=5 // pred_check
        _
      $region10: #{tpu_custom_call.1} parent=5 // pred_check_branch
        %197 = sbr.rel (%p194) target = $region12
      $region11: #{tpu_custom_call.1} parent=5 // pred_region
        %s198 = ssub.s32 %s22, 1
        // Predicated region
        $region13: #{tpu_custom_call.1} parent=11 // pred_check
          %p199 = pneg %p95
        $region14: #{tpu_custom_call.1} parent=11 // pred_check_branch
          %201 = sbr.rel (%p199) target = $region16
        $region15: #{tpu_custom_call.1} parent=11 // pred_region
          %s203 = ssub.s32 2048, 2048
          %204 = vsyncadd [#allocation6], %s203
          %s205 = sshll.u32 [#allocation7], 4
          %s206 = int_to_ptr.vmem [resolvable:$true] %s205
          %211 = dma.hbm_to_vmem [thread:$0]  %s2, 2048, %s206, [#allocation6], 64, 64, 4
        $region16: #{tpu_custom_call.1} parent=11 // pred_fallthru
          _
        // Predicated region
        $region17: #{tpu_custom_call.1} parent=11 // pred_check
          %p212 = pneg %p116
        $region18: #{tpu_custom_call.1} parent=11 // pred_check_branch
          %214 = sbr.rel (%p212) target = $region20
        $region19: #{tpu_custom_call.1} parent=11 // pred_region
          _
        $region20: #{tpu_custom_call.1} parent=11 // pred_fallthru
          _
        // Predicated region
        $region21: #{tpu_custom_call.1} parent=11 // pred_check
          %p215 = pneg %p137
        $region22: #{tpu_custom_call.1} parent=11 // pred_check_branch
          %217 = sbr.rel (%p215) target = $region24
        $region23: #{tpu_custom_call.1} parent=11 // pred_region
          %s219 = ssub.s32 2048, 2048
          %220 = vsyncadd [#allocation9], %s219
          %s221 = sshll.u32 [#allocation8], 4
          %s222 = int_to_ptr.vmem [resolvable:$true] %s221
          %227 = dma.hbm_to_vmem [thread:$0]  %s4, 2048, %s222, [#allocation9], 64, 64, 4
        $region24: #{tpu_custom_call.1} parent=11 // pred_fallthru
          _
        // Predicated region
        $region25: #{tpu_custom_call.1} parent=11 // pred_check
          %p228 = pneg %p158
        $region26: #{tpu_custom_call.1} parent=11 // pred_check_branch
          %230 = sbr.rel (%p228) target = $region28
        $region27: #{tpu_custom_call.1} parent=11 // pred_region
          _
        $region28: #{tpu_custom_call.1} parent=11 // pred_fallthru
          _
      $region12: #{tpu_custom_call.1} parent=5 // pred_fallthru
        _
      %p231 = scmp.lt.s32.totalorder %s22, 2
      // Predicated region
      $region29: #{tpu_custom_call.1} parent=5 // pred_check
        %p232 = pneg %p231
      $region30: #{tpu_custom_call.1} parent=5 // pred_check_branch
        %234 = sbr.rel (%p232) target = $region32
      $region31: #{tpu_custom_call.1} parent=5 // pred_region
        // Predicated region
        $region33: #{tpu_custom_call.1} parent=31 // pred_check
          %p235 = pneg %p42
        $region34: #{tpu_custom_call.1} parent=31 // pred_check_branch
          %237 = sbr.rel (%p235) target = $region36
        $region35: #{tpu_custom_call.1} parent=31 // pred_region
          %s238 = sand.u32 %s32, 1
          %s239 = scalar_lea.sflag [#allocation3], %s238
          %s240 = sand.u32 %s32, 1
          %s241 = smul.addr %s240, 4
          %s242 = scalar_lea.vmem [#allocation2], %s241
          %s244 = ssub.s32 64, 64
          %245 = vsyncadd %s239, %s244
          %s246 = smul.addr %s22, 64
          %s247 = scalar_lea.hbm %s0, %s246
          %s249 = sshll.u32 %s242, 4
          %s250 = int_to_ptr.vmem [resolvable:$true] %s249
          %252 = dma.hbm_to_vmem [thread:$0]  %s247, 64, %s250, %s239
        $region36: #{tpu_custom_call.1} parent=31 // pred_fallthru
          _
        // Predicated region
        $region37: #{tpu_custom_call.1} parent=31 // pred_check
          %p253 = pneg %p68
        $region38: #{tpu_custom_call.1} parent=31 // pred_check_branch
          %255 = sbr.rel (%p253) target = $region40
        $region39: #{tpu_custom_call.1} parent=31 // pred_region
          %s256 = sand.u32 %s22, 1
          %s257 = scalar_lea.sflag [#allocation6], %s256
          %s258 = sand.u32 %s58, 1
          %s259 = smul.addr %s258, 4
          %s260 = scalar_lea.vmem [#allocation5], %s259
          %s262 = ssub.s32 64, 64
          %263 = vsyncadd %s257, %s262
          %s264 = smul.addr %s22, 64
          %s265 = scalar_lea.hbm %s1, %s264
          %s267 = sshll.u32 %s260, 4
          %s268 = int_to_ptr.vmem [resolvable:$true] %s267
          %270 = dma.hbm_to_vmem [thread:$0]  %s265, 64, %s268, %s257
        $region40: #{tpu_custom_call.1} parent=31 // pred_fallthru
          _
      $region32: #{tpu_custom_call.1} parent=5 // pred_fallthru
        _
      %p271 = scmp.le.s32.totalorder 1, %s22
      %p272 = scmp.lt.s32.totalorder %s22, 3
      %p273 = pnand %p271, %p272
      %p274 = pneg %p273
      // Predicated region
      $region41: #{tpu_custom_call.1} parent=5 // pred_check
        _
      $region42: #{tpu_custom_call.1} parent=5 // pred_check_branch
        %276 = sbr.rel (%p273) target = $region44
      $region43: #{tpu_custom_call.1} parent=5 // pred_region
        %s277 = ssub.s32 %s22, 1
        %s278 = sand.u32 %s35, 1
        %s279 = scalar_lea.sflag [#allocation3], %s278
        %s280 = sand.u32 %s35, 1
        %s281 = smul.addr %s280, 4
        %s282 = scalar_lea.vmem [#allocation2], %s281
        // Predicated region
        $region45: #{tpu_custom_call.1} parent=43 // pred_check
          %p283 = pneg %p48
        $region46: #{tpu_custom_call.1} parent=43 // pred_check_branch
          %285 = sbr.rel (%p283) target = $region48
        $region47: #{tpu_custom_call.1} parent=43 // pred_region
          %286 = dma.done %s279, 64
        $region48: #{tpu_custom_call.1} parent=43 // pred_fallthru
          _
        %s287 = sand.u32 %s27, 1
        %s288 = scalar_lea.sflag [#allocation6], %s287
        %s289 = sand.u32 %s61, 1
        %s290 = smul.addr %s289, 4
        %s291 = scalar_lea.vmem [#allocation5], %s290
        // Predicated region
        $region49: #{tpu_custom_call.1} parent=43 // pred_check
          %p292 = pneg %p74
        $region50: #{tpu_custom_call.1} parent=43 // pred_check_branch
          %294 = sbr.rel (%p292) target = $region52
        $region51: #{tpu_custom_call.1} parent=43 // pred_region
          %295 = dma.done %s288, 64
        $region52: #{tpu_custom_call.1} parent=43 // pred_fallthru
          _
        // Predicated region
        $region53: #{tpu_custom_call.1} parent=43 // pred_check
          %p296 = pneg %p95
        $region54: #{tpu_custom_call.1} parent=43 // pred_check_branch
          %298 = sbr.rel (%p296) target = $region56
        $region55: #{tpu_custom_call.1} parent=43 // pred_region
          %299 = dma.done [#allocation6], 2048
        $region56: #{tpu_custom_call.1} parent=43 // pred_fallthru
          _
        // Predicated region
        $region57: #{tpu_custom_call.1} parent=43 // pred_check
          %p300 = pneg %p137
        $region58: #{tpu_custom_call.1} parent=43 // pred_check_branch
          %302 = sbr.rel (%p300) target = $region60
        $region59: #{tpu_custom_call.1} parent=43 // pred_region
          %303 = dma.done [#allocation9], 2048
        $region60: #{tpu_custom_call.1} parent=43 // pred_fallthru
          _
        %s304 = sand.u32 %s35, 1
        %s305 = scalar_lea.sflag [#allocation3], %s304
        %s306 = sand.u32 %s35, 1
        %s307 = smul.addr %s306, 4
        %s308 = scalar_lea.vmem [#allocation2], %s307
        %p309 = pneg %p48
        %p310 = pneg %p45
        %s311 = sand.u32 %s27, 1
        %s312 = scalar_lea.sflag [#allocation6], %s311
        %s313 = sand.u32 %s61, 1
        %s314 = smul.addr %s313, 4
        %s315 = scalar_lea.vmem [#allocation5], %s314
        %p316 = pneg %p74
        %p317 = pneg %p71
        %p318 = pneg %p95
        %p319 = pneg %p92
        %p320 = pneg %p116
        %p321 = pneg %p113
        %p322 = pneg %p137
        %p323 = pneg %p134
        %p324 = pneg %p158
        %p325 = pneg %p155
        %p326 = pneg %p184
        %p327 = pneg %p181
        %s328 = sand.u32 %s171, 1
        %s329 = scalar_lea.sflag [#allocation4], %s328
        %s330 = sand.u32 %s171, 1
        %s331 = smul.addr %s330, 8
        %s332 = scalar_lea.vmem [#allocation10], %s331
        %v334 = vld [vmem:[%s291] sm:$0xf]
        %v335 = vunpack.c.l.bf16 %v334
        %337 = vrot.lane.b32.xlu0 %v335, 96
        %v338 = vpop.permute.xlu0 %337
        %v340 = vmax.f32 %v335, %v338
        %342 = vrot.lane.b32.xlu0 %v340, 112
        %v343 = vpop.permute.xlu0 %342
        %v345 = vmax.f32 %v340, %v343
        %v346 = vld [vmem:[%s282] sm:$0xf]
        %v347 = vunpack.c.l.bf16 %v346
        %349 = vrot.lane.b32.xlu0 %v345, 16
        %v350 = vpop.permute.xlu0 %349
        %vm352 = vcmask 130048
        %v353 = vsel %vm352, %v347, %v350
        %vm354 = vcmask 261120
        %v355 = vsel %vm354, %v353, 0.0
        %v356 = vpack.c.bf16 %v355, %v355
        %v357 = vld [vmem:[#allocation7] sm:$0xf]
        %v358 = vld [vmem:[#allocation7 + $0x4] sm:$0xf]
        %v359 = vld [vmem:[#allocation7 + $0x8] sm:$0xf]
        %v360 = vld [vmem:[#allocation7 + $0xc] sm:$0xf]
        %v361 = vld [vmem:[#allocation7 + $0x10] sm:$0xf]
        %v362 = vld [vmem:[#allocation7 + $0x14] sm:$0xf]
        %v363 = vld [vmem:[#allocation7 + $0x18] sm:$0xf]
        %v364 = vld [vmem:[#allocation7 + $0x1c] sm:$0xf]
        %v365 = vld [vmem:[#allocation7 + $0x20] sm:$0xf]
        %v366 = vld [vmem:[#allocation7 + $0x24] sm:$0xf]
        %v367 = vld [vmem:[#allocation7 + $0x28] sm:$0xf]
        %v368 = vld [vmem:[#allocation7 + $0x2c] sm:$0xf]
        %v369 = vld [vmem:[#allocation7 + $0x30] sm:$0xf]
        %v370 = vld [vmem:[#allocation7 + $0x34] sm:$0xf]
        %v371 = vld [vmem:[#allocation7 + $0x38] sm:$0xf]
        %v372 = vld [vmem:[#allocation7 + $0x3c] sm:$0xf]
        %v373 = vld [vmem:[%s3] sm:$0x1]
        %v375 = vlaneseq
        %v376 = vshrl.u32 %v375, 7
        %v377 = vsub.s32 0, %v376
        %v378 = vrot.slane %v373, %v377
        %v396 = vunpack.c.l.b16 %v357
        %v397 = vunpack.c.l.b16 %v358
        %v398 = vunpack.c.l.b16 %v359
        %v399 = vunpack.c.l.b16 %v360
        %v400 = vunpack.c.l.b16 %v361
        %v401 = vunpack.c.l.b16 %v362
        %v402 = vunpack.c.l.b16 %v363
        %v403 = vunpack.c.l.b16 %v364
        %v404 = vunpack.c.l.b16 %v365
        %v405 = vunpack.c.l.b16 %v366
        %v406 = vunpack.c.l.b16 %v367
        %v407 = vunpack.c.l.b16 %v368
        %v408 = vunpack.c.l.b16 %v369
        %v409 = vunpack.c.l.b16 %v370
        %v410 = vunpack.c.l.b16 %v371
        %v411 = vunpack.c.l.b16 %v372
        %v412 = vpack.c.b16 %v397, %v396
        %v413 = vpack.c.b16 %v399, %v398
        %v414 = vpack.c.b16 %v401, %v400
        %v415 = vpack.c.b16 %v403, %v402
        %v416 = vpack.c.b16 %v405, %v404
        %v417 = vpack.c.b16 %v407, %v406
        %v418 = vpack.c.b16 %v409, %v408
        %v419 = vpack.c.b16 %v411, %v410
        %428 = vmatprep.subr.bf16.mxu0 0
        %429 = vmatpush1.bf16.msra.mxu0 %v419
        %430 = vmatprep.subr.bf16.mxu0 0
        %431 = vmatpush1.bf16.msra.mxu0 %v418
        %432 = vmatprep.subr.bf16.mxu0 0
        %433 = vmatpush1.bf16.msra.mxu0 %v417
        %434 = vmatprep.subr.bf16.mxu0 0
        %435 = vmatpush1.bf16.msra.mxu0 %v416
        %436 = vmatprep.subr.bf16.mxu0 0
        %437 = vmatpush1.bf16.msra.mxu0 %v415
        %438 = vmatprep.subr.bf16.mxu0 0
        %439 = vmatpush1.bf16.msra.mxu0 %v414
        %440 = vmatprep.subr.bf16.mxu0 0
        %441 = vmatpush1.bf16.msra.mxu0 %v413
        %442 = vmatprep.subr.bf16.mxu0 0
        %443 = vmatpush1.bf16.msra.mxu0 %v412
        %444 = vmatprep.subr.bf16.mxu0 0
        %445 = vmatpush2.bf16.msra.mxu0 0
        %446 = vmatprep.subr.bf16.mxu0 0
        %447 = vmatpush2.bf16.msra.mxu0 0
        %448 = vmatprep.subr.bf16.mxu0 0
        %449 = vmatpush2.bf16.msra.mxu0 0
        %450 = vmatprep.subr.bf16.mxu0 0
        %451 = vmatpush2.bf16.msra.mxu0 0
        %452 = vmatprep.subr.bf16.mxu0 0
        %453 = vmatpush2.bf16.msra.mxu0 0
        %454 = vmatprep.subr.bf16.mxu0 0
        %455 = vmatpush2.bf16.msra.mxu0 0
        %456 = vmatprep.subr.bf16.mxu0 0
        %457 = vmatpush2.bf16.msra.mxu0 0
        %458 = vmatprep.subr.bf16.mxu0 0
        %459 = vmatpush2.bf16.msra.mxu0 0
        %460 = vmatprep.mubr.bf16.mxu0 0
        %461 = vmatmul.mubr.bf16.gmra.mxu0 %v356
        %v462 = vpop.f32.mrf.mxu0
        %v463 = vadd.f32 %v378, %v462
        %v464 = vpop.f32.mrf.mxu0
        %v465 = vpop.f32.mrf.mxu0
        %v466 = vpop.f32.mrf.mxu0
        %467 = vdwg.mxu0
        %v468 = vmax.f32 %v463, 0.0
        %v469 = vld [vmem:[#allocation8] sm:$0xf]
        %v470 = vld [vmem:[#allocation8 + $0x4] sm:$0xf]
        %v471 = vld [vmem:[#allocation8 + $0x8] sm:$0xf]
        %v472 = vld [vmem:[#allocation8 + $0xc] sm:$0xf]
        %v473 = vld [vmem:[#allocation8 + $0x10] sm:$0xf]
        %v474 = vld [vmem:[#allocation8 + $0x14] sm:$0xf]
        %v475 = vld [vmem:[#allocation8 + $0x18] sm:$0xf]
        %v476 = vld [vmem:[#allocation8 + $0x1c] sm:$0xf]
        %v477 = vld [vmem:[#allocation8 + $0x20] sm:$0xf]
        %v478 = vld [vmem:[#allocation8 + $0x24] sm:$0xf]
        %v479 = vld [vmem:[#allocation8 + $0x28] sm:$0xf]
        %v480 = vld [vmem:[#allocation8 + $0x2c] sm:$0xf]
        %v481 = vld [vmem:[#allocation8 + $0x30] sm:$0xf]
        %v482 = vld [vmem:[#allocation8 + $0x34] sm:$0xf]
        %v483 = vld [vmem:[#allocation8 + $0x38] sm:$0xf]
        %v484 = vld [vmem:[#allocation8 + $0x3c] sm:$0xf]
        %v485 = vld [vmem:[%s5] sm:$0x1]
        %v487 = vlaneseq
        %v488 = vshrl.u32 %v487, 7
        %v489 = vsub.s32 0, %v488
        %v490 = vrot.slane %v485, %v489
        %v508 = vunpack.c.l.b16 %v469
        %v509 = vunpack.c.l.b16 %v470
        %v510 = vunpack.c.l.b16 %v471
        %v511 = vunpack.c.l.b16 %v472
        %v512 = vunpack.c.l.b16 %v473
        %v513 = vunpack.c.l.b16 %v474
        %v514 = vunpack.c.l.b16 %v475
        %v515 = vunpack.c.l.b16 %v476
        %v516 = vunpack.c.l.b16 %v477
        %v517 = vunpack.c.l.b16 %v478
        %v518 = vunpack.c.l.b16 %v479
        %v519 = vunpack.c.l.b16 %v480
        %v520 = vunpack.c.l.b16 %v481
        %v521 = vunpack.c.l.b16 %v482
        %v522 = vunpack.c.l.b16 %v483
        %v523 = vunpack.c.l.b16 %v484
        %v524 = vpack.c.b16 %v509, %v508
        %v525 = vpack.c.b16 %v511, %v510
        %v526 = vpack.c.b16 %v513, %v512
        %v527 = vpack.c.b16 %v515, %v514
        %v528 = vpack.c.b16 %v517, %v516
        %v529 = vpack.c.b16 %v519, %v518
        %v530 = vpack.c.b16 %v521, %v520
        %v531 = vpack.c.b16 %v523, %v522
        %540 = vmatprep.subr.bf16.mxu0 0
        %541 = vmatpush1.bf16.msra.mxu0 %v531
        %542 = vmatprep.subr.bf16.mxu0 0
        %543 = vmatpush1.bf16.msra.mxu0 %v530
        %544 = vmatprep.subr.bf16.mxu0 0
        %545 = vmatpush1.bf16.msra.mxu0 %v529
        %546 = vmatprep.subr.bf16.mxu0 0
        %547 = vmatpush1.bf16.msra.mxu0 %v528
        %548 = vmatprep.subr.bf16.mxu0 0
        %549 = vmatpush1.bf16.msra.mxu0 %v527
        %550 = vmatprep.subr.bf16.mxu0 0
        %551 = vmatpush1.bf16.msra.mxu0 %v526
        %552 = vmatprep.subr.bf16.mxu0 0
        %553 = vmatpush1.bf16.msra.mxu0 %v525
        %554 = vmatprep.subr.bf16.mxu0 0
        %555 = vmatpush1.bf16.msra.mxu0 %v524
        %556 = vmatprep.subr.bf16.mxu0 0
        %557 = vmatpush2.bf16.msra.mxu0 0
        %558 = vmatprep.subr.bf16.mxu0 0
        %559 = vmatpush2.bf16.msra.mxu0 0
        %560 = vmatprep.subr.bf16.mxu0 0
        %561 = vmatpush2.bf16.msra.mxu0 0
        %562 = vmatprep.subr.bf16.mxu0 0
        %563 = vmatpush2.bf16.msra.mxu0 0
        %564 = vmatprep.subr.bf16.mxu0 0
        %565 = vmatpush2.bf16.msra.mxu0 0
        %566 = vmatprep.subr.bf16.mxu0 0
        %567 = vmatpush2.bf16.msra.mxu0 0
        %568 = vmatprep.subr.bf16.mxu0 0
        %569 = vmatpush2.bf16.msra.mxu0 0
        %570 = vmatprep.subr.bf16.mxu0 0
        %571 = vmatpush2.bf16.msra.mxu0 0
        %572 = vmatprep.mubr.bf16.mxu0 0
        %573 = vmatmul.mubr.bf16.gmra.mxu0 %v356
        %v574 = vpop.f32.mrf.mxu0
        %v575 = vadd.f32 %v490, %v574
        %v576 = vpop.f32.mrf.mxu0
        %v577 = vpop.f32.mrf.mxu0
        %v578 = vpop.f32.mrf.mxu0
        %579 = vdwg.mxu0
        %v580 = vxor.u32 %v575, 2147483648
        %v581 = vmul.f32 %v580, 1.442695
        %v582 = vpow.pop %v581
        %v583 = vadd.f32 %v582, 1.0
        %v584 = vrcp.pop %v583
        %v585 = vmul.f32 1.0, %v584
        %v586 = vsub.f32 %v468, %v355
        %v587 = vmul.f32 %v585, %v586
        %v588 = vadd.f32 %v355, %v587
        %v589 = vpack.c.bf16 %v588, %v588
        %s590 = scalar_lea.vmem [#allocation7], 64
        %v591 = vld [vmem:[%s590] sm:$0xf]
        %v592 = vld [vmem:[%s590 + $0x4] sm:$0xf]
        %v593 = vld [vmem:[%s590 + $0x8] sm:$0xf]
        %v594 = vld [vmem:[%s590 + $0xc] sm:$0xf]
        %v595 = vld [vmem:[%s590 + $0x10] sm:$0xf]
        %v596 = vld [vmem:[%s590 + $0x14] sm:$0xf]
        %v597 = vld [vmem:[%s590 + $0x18] sm:$0xf]
        %v598 = vld [vmem:[%s590 + $0x1c] sm:$0xf]
        %v599 = vld [vmem:[%s590 + $0x20] sm:$0xf]
        %v600 = vld [vmem:[%s590 + $0x24] sm:$0xf]
        %v601 = vld [vmem:[%s590 + $0x28] sm:$0xf]
        %v602 = vld [vmem:[%s590 + $0x2c] sm:$0xf]
        %v603 = vld [vmem:[%s590 + $0x30] sm:$0xf]
        %v604 = vld [vmem:[%s590 + $0x34] sm:$0xf]
        %v605 = vld [vmem:[%s590 + $0x38] sm:$0xf]
        %v606 = vld [vmem:[%s590 + $0x3c] sm:$0xf]
        %s607 = scalar_lea.vmem %s3, 1
        %v608 = vld [vmem:[%s607] sm:$0x1]
        %v610 = vlaneseq
        %v611 = vshrl.u32 %v610, 7
        %v612 = vsub.s32 0, %v611
        %v613 = vrot.slane %v608, %v612
        %v631 = vunpack.c.l.b16 %v591
        %v632 = vunpack.c.l.b16 %v592
        %v633 = vunpack.c.l.b16 %v593
        %v634 = vunpack.c.l.b16 %v594
        %v635 = vunpack.c.l.b16 %v595
        %v636 = vunpack.c.l.b16 %v596
        %v637 = vunpack.c.l.b16 %v597
        %v638 = vunpack.c.l.b16 %v598
        %v639 = vunpack.c.l.b16 %v599
        %v640 = vunpack.c.l.b16 %v600
        %v641 = vunpack.c.l.b16 %v601
        %v642 = vunpack.c.l.b16 %v602
        %v643 = vunpack.c.l.b16 %v603
        %v644 = vunpack.c.l.b16 %v604
        %v645 = vunpack.c.l.b16 %v605
        %v646 = vunpack.c.l.b16 %v606
        %v647 = vpack.c.b16 %v632, %v631
        %v648 = vpack.c.b16 %v634, %v633
        %v649 = vpack.c.b16 %v636, %v635
        %v650 = vpack.c.b16 %v638, %v637
        %v651 = vpack.c.b16 %v640, %v639
        %v652 = vpack.c.b16 %v642, %v641
        %v653 = vpack.c.b16 %v644, %v643
        %v654 = vpack.c.b16 %v646, %v645
        %663 = vmatprep.subr.bf16.mxu0 0
        %664 = vmatpush1.bf16.msra.mxu0 %v654
        %665 = vmatprep.subr.bf16.mxu0 0
        %666 = vmatpush1.bf16.msra.mxu0 %v653
        %667 = vmatprep.subr.bf16.mxu0 0
        %668 = vmatpush1.bf16.msra.mxu0 %v652
        %669 = vmatprep.subr.bf16.mxu0 0
        %670 = vmatpush1.bf16.msra.mxu0 %v651
        %671 = vmatprep.subr.bf16.mxu0 0
        %672 = vmatpush1.bf16.msra.mxu0 %v650
        %673 = vmatprep.subr.bf16.mxu0 0
        %674 = vmatpush1.bf16.msra.mxu0 %v649
        %675 = vmatprep.subr.bf16.mxu0 0
        %676 = vmatpush1.bf16.msra.mxu0 %v648
        %677 = vmatprep.subr.bf16.mxu0 0
        %678 = vmatpush1.bf16.msra.mxu0 %v647
        %679 = vmatprep.subr.bf16.mxu0 0
        %680 = vmatpush2.bf16.msra.mxu0 0
        %681 = vmatprep.subr.bf16.mxu0 0
        %682 = vmatpush2.bf16.msra.mxu0 0
        %683 = vmatprep.subr.bf16.mxu0 0
        %684 = vmatpush2.bf16.msra.mxu0 0
        %685 = vmatprep.subr.bf16.mxu0 0
        %686 = vmatpush2.bf16.msra.mxu0 0
        %687 = vmatprep.subr.bf16.mxu0 0
        %688 = vmatpush2.bf16.msra.mxu0 0
        %689 = vmatprep.subr.bf16.mxu0 0
        %690 = vmatpush2.bf16.msra.mxu0 0
        %691 = vmatprep.subr.bf16.mxu0 0
        %692 = vmatpush2.bf16.msra.mxu0 0
        %693 = vmatprep.subr.bf16.mxu0 0
        %694 = vmatpush2.bf16.msra.mxu0 0
        %695 = vmatprep.mubr.bf16.mxu0 0
        %696 = vmatmul.mubr.bf16.gmra.mxu0 %v589
        %v697 = vpop.f32.mrf.mxu0
        %v698 = vadd.f32 %v613, %v697
        %v699 = vpop.f32.mrf.mxu0
        %v700 = vpop.f32.mrf.mxu0
        %v701 = vpop.f32.mrf.mxu0
        %702 = vdwg.mxu0
        %v703 = vmax.f32 %v698, 0.0
        %s704 = scalar_lea.vmem [#allocation8], 64
        %v705 = vld [vmem:[%s704] sm:$0xf]
        %v706 = vld [vmem:[%s704 + $0x4] sm:$0xf]
        %v707 = vld [vmem:[%s704 + $0x8] sm:$0xf]
        %v708 = vld [vmem:[%s704 + $0xc] sm:$0xf]
        %v709 = vld [vmem:[%s704 + $0x10] sm:$0xf]
        %v710 = vld [vmem:[%s704 + $0x14] sm:$0xf]
        %v711 = vld [vmem:[%s704 + $0x18] sm:$0xf]
        %v712 = vld [vmem:[%s704 + $0x1c] sm:$0xf]
        %v713 = vld [vmem:[%s704 + $0x20] sm:$0xf]
        %v714 = vld [vmem:[%s704 + $0x24] sm:$0xf]
        %v715 = vld [vmem:[%s704 + $0x28] sm:$0xf]
        %v716 = vld [vmem:[%s704 + $0x2c] sm:$0xf]
        %v717 = vld [vmem:[%s704 + $0x30] sm:$0xf]
        %v718 = vld [vmem:[%s704 + $0x34] sm:$0xf]
        %v719 = vld [vmem:[%s704 + $0x38] sm:$0xf]
        %v720 = vld [vmem:[%s704 + $0x3c] sm:$0xf]
        %s721 = scalar_lea.vmem %s5, 1
        %v722 = vld [vmem:[%s721] sm:$0x1]
        %v724 = vlaneseq
        %v725 = vshrl.u32 %v724, 7
        %v726 = vsub.s32 0, %v725
        %v727 = vrot.slane %v722, %v726
        %v745 = vunpack.c.l.b16 %v705
        %v746 = vunpack.c.l.b16 %v706
        %v747 = vunpack.c.l.b16 %v707
        %v748 = vunpack.c.l.b16 %v708
        %v749 = vunpack.c.l.b16 %v709
        %v750 = vunpack.c.l.b16 %v710
        %v751 = vunpack.c.l.b16 %v711
        %v752 = vunpack.c.l.b16 %v712
        %v753 = vunpack.c.l.b16 %v713
        %v754 = vunpack.c.l.b16 %v714
        %v755 = vunpack.c.l.b16 %v715
        %v756 = vunpack.c.l.b16 %v716
        %v757 = vunpack.c.l.b16 %v717
        %v758 = vunpack.c.l.b16 %v718
        %v759 = vunpack.c.l.b16 %v719
        %v760 = vunpack.c.l.b16 %v720
        %v761 = vpack.c.b16 %v746, %v745
        %v762 = vpack.c.b16 %v748, %v747
        %v763 = vpack.c.b16 %v750, %v749
        %v764 = vpack.c.b16 %v752, %v751
        %v765 = vpack.c.b16 %v754, %v753
        %v766 = vpack.c.b16 %v756, %v755
        %v767 = vpack.c.b16 %v758, %v757
        %v768 = vpack.c.b16 %v760, %v759
        %777 = vmatprep.subr.bf16.mxu0 0
        %778 = vmatpush1.bf16.msra.mxu0 %v768
        %779 = vmatprep.subr.bf16.mxu0 0
        %780 = vmatpush1.bf16.msra.mxu0 %v767
        %781 = vmatprep.subr.bf16.mxu0 0
        %782 = vmatpush1.bf16.msra.mxu0 %v766
        %783 = vmatprep.subr.bf16.mxu0 0
        %784 = vmatpush1.bf16.msra.mxu0 %v765
        %785 = vmatprep.subr.bf16.mxu0 0
        %786 = vmatpush1.bf16.msra.mxu0 %v764
        %787 = vmatprep.subr.bf16.mxu0 0
        %788 = vmatpush1.bf16.msra.mxu0 %v763
        %789 = vmatprep.subr.bf16.mxu0 0
        %790 = vmatpush1.bf16.msra.mxu0 %v762
        %791 = vmatprep.subr.bf16.mxu0 0
        %792 = vmatpush1.bf16.msra.mxu0 %v761
        %793 = vmatprep.subr.bf16.mxu0 0
        %794 = vmatpush2.bf16.msra.mxu0 0
        %795 = vmatprep.subr.bf16.mxu0 0
        %796 = vmatpush2.bf16.msra.mxu0 0
        %797 = vmatprep.subr.bf16.mxu0 0
        %798 = vmatpush2.bf16.msra.mxu0 0
        %799 = vmatprep.subr.bf16.mxu0 0
        %800 = vmatpush2.bf16.msra.mxu0 0
        %801 = vmatprep.subr.bf16.mxu0 0
        %802 = vmatpush2.bf16.msra.mxu0 0
        %803 = vmatprep.subr.bf16.mxu0 0
        %804 = vmatpush2.bf16.msra.mxu0 0
        %805 = vmatprep.subr.bf16.mxu0 0
        %806 = vmatpush2.bf16.msra.mxu0 0
        %807 = vmatprep.subr.bf16.mxu0 0
        %808 = vmatpush2.bf16.msra.mxu0 0
        %809 = vmatprep.mubr.bf16.mxu0 0
        %810 = vmatmul.mubr.bf16.gmra.mxu0 %v589
        %v811 = vpop.f32.mrf.mxu0
        %v812 = vadd.f32 %v727, %v811
        %v813 = vpop.f32.mrf.mxu0
        %v814 = vpop.f32.mrf.mxu0
        %v815 = vpop.f32.mrf.mxu0
        %816 = vdwg.mxu0
        %v817 = vxor.u32 %v812, 2147483648
        %v818 = vmul.f32 %v817, 1.442695
        %v819 = vpow.pop %v818
        %v820 = vadd.f32 %v819, 1.0
        %v821 = vrcp.pop %v820
        %v822 = vmul.f32 1.0, %v821
        %v823 = vsub.f32 %v703, %v588
        %v824 = vmul.f32 %v822, %v823
        %v825 = vadd.f32 %v588, %v824
        %826 = vst.msk [vmem:[%s332] sm:$0xff] %vm354, %v825
        %s827 = sand.u32 %s171, 1
        %s828 = scalar_lea.sflag [#allocation4], %s827
        %s829 = sand.u32 %s171, 1
        %s830 = smul.addr %s829, 8
        %s831 = scalar_lea.vmem [#allocation10], %s830
        // Predicated region
        $region61: #{tpu_custom_call.1} parent=43 // pred_check
          %p832 = pneg %p181
        $region62: #{tpu_custom_call.1} parent=43 // pred_check_branch
          %834 = sbr.rel (%p832) target = $region64
        $region63: #{tpu_custom_call.1} parent=43 // pred_region
          %s836 = ssub.s32 128, 128
          %837 = vsyncadd %s828, %s836
          %s838 = smul.addr %s27, 128
          %s839 = scalar_lea.hbm %s6, %s838
          %s841 = sshll.u32 %s831, 4
          %s842 = int_to_ptr.vmem [resolvable:$true] %s841
          %844 = dma.vmem_to_hbm [thread:$0]  %s842, 128, %s839, %s828
        $region64: #{tpu_custom_call.1} parent=43 // pred_fallthru
          _
      $region44: #{tpu_custom_call.1} parent=5 // pred_fallthru
        _
      %p845 = scmp.le.s32.totalorder 2, %s22
      // Predicated region
      $region65: #{tpu_custom_call.1} parent=5 // pred_check
        %p846 = pneg %p845
      $region66: #{tpu_custom_call.1} parent=5 // pred_check_branch
        %848 = sbr.rel (%p846) target = $region68
      $region67: #{tpu_custom_call.1} parent=5 // pred_region
        %s849 = ssub.s32 %s22, 2
        // Predicated region
        $region69: #{tpu_custom_call.1} parent=67 // pred_check
          %p850 = pneg %p187
        $region70: #{tpu_custom_call.1} parent=67 // pred_check_branch
          %852 = sbr.rel (%p850) target = $region72
        $region71: #{tpu_custom_call.1} parent=67 // pred_region
          %s853 = sand.u32 %s172, 1
          %s854 = scalar_lea.sflag [#allocation4], %s853
          %s855 = sand.u32 %s172, 1
          %s856 = smul.addr %s855, 8
          %s857 = scalar_lea.vmem [#allocation10], %s856
          %858 = dma.done %s854, 128
        $region72: #{tpu_custom_call.1} parent=67 // pred_fallthru
          _
      $region68: #{tpu_custom_call.1} parent=5 // pred_fallthru
        _
    $region6: #{tpu_custom_call.1} parent=1 // loop_footer
      %s26 = sadd.s32 1, %s22
    $region7: #{tpu_custom_call.1} parent=1 // loop_footer_branch
      %21 = sbr.rel target = $region3
    $region8: #{tpu_custom_call.1} parent=1 // loop_exit
      _
    %859 = vsyncpa [#allocation3], 1
    %s860 = scalar_lea.sflag [#allocation3], 1
    %861 = vsyncpa %s860, 1
    %862 = vsyncpa [#allocation6], 1
    %s863 = scalar_lea.sflag [#allocation6], 1
    %864 = vsyncpa %s863, 1
    %865 = vsyncpa [#allocation9], 1
    %866 = vsyncpa [#allocation4], 1
    %s867 = scalar_lea.sflag [#allocation4], 1
    %868 = vsyncpa %s867, 1

</llo_original>
